<compile_context>
chip_gen: v6e
topology: v6e:2x2x1
jax: 0.10.0
libtpu: 0.0.40
codegen_flags: <defaults>
</compile_context>

<pallas_src>
import functools

import jax
import jax.numpy as jnp
from jax.experimental import pallas as pl
from jax.experimental.pallas import tpu as pltpu


# ----------------------------------------------------------------------------
# Kernel
# ----------------------------------------------------------------------------
def _adv_kernel(x_ref, w1_ref, b1_ref, w2_ref, b2_ref, w3_ref, b3_ref, o_ref):
    # Layer 1: MXU matmul (bf16 operands, f32 accumulation) + bias + relu.
    h1 = jnp.dot(x_ref[...], w1_ref[...],
                 preferred_element_type=jnp.float32) + b1_ref[...]
    h1 = jnp.maximum(h1, 0.0)                     # relu1 (dropout1 = identity, eval)

    # Layer 2: same pattern.
    h2 = jnp.dot(h1.astype(jnp.bfloat16), w2_ref[...],
                 preferred_element_type=jnp.float32) + b2_ref[...]
    h2 = jnp.maximum(h2, 0.0)                     # relu2 (dropout2 = identity, eval)

    # Layer 3 (H -> 1): VPU multiply + XLU lane reduction against the (1, H)
    # w3 row.  A single-output-column MXU pass would waste almost the whole
    # systolic array while still paying the full push/drain cadence; the MXU
    # is already the binding unit for the two H-wide matmuls above.
    logit = jnp.sum(h2 * w3_ref[...], axis=-1, keepdims=True) + b3_ref[0, 0]

    # Sigmoid on the EUP (tanh) instead of a full-precision VALU divide.
    y = 0.5 * (jnp.tanh(0.5 * logit) + 1.0)

    # True (block_b, 1) store — output HBM traffic is B*4 bytes, not B*512.
    o_ref[...] = y.astype(o_ref.dtype)


# ----------------------------------------------------------------------------
# Feature probe: single-buffered constant blocks via pipeline_mode=Buffered(1)
# ----------------------------------------------------------------------------
def _probe_kernel(c_ref, o_ref):
    o_ref[...] = c_ref[...]


@functools.lru_cache(maxsize=None)
def _single_buffered_constants_supported():
    """One-time cached feature probe (review: replace the broad
    `except Exception` around the real kernel with a dedicated probe)."""
    try:
        out = pl.pallas_call(
            _probe_kernel,
            out_shape=jax.ShapeDtypeStruct((16, 128), jnp.float32),
            grid_spec=pltpu.PrefetchScalarGridSpec(
                num_scalar_prefetch=0,
                grid=(2,),
                in_specs=[pl.BlockSpec((8, 128), lambda i: (0, 0),
                                       pipeline_mode=pl.Buffered(1))],
                out_specs=pl.BlockSpec((8, 128), lambda i: (i, 0)),
            ),
        )(jnp.zeros((8, 128), jnp.float32))
        jax.block_until_ready(out)
        return True
    except Exception:  # probe only — the real kernel call is never wrapped
        return False


# ----------------------------------------------------------------------------
# VMEM budgeting / batch tiling
# ----------------------------------------------------------------------------
def _round_up(v, m):
    return -(-v // m) * m


def _vmem_budget_bytes():
    """~85% of physical per-core VMEM: ~54 MiB on v7x, ~108 MiB on v5e/v6e.
    Leaves headroom for compiler-internal scratch and spills."""
    try:
        cap = int(pltpu.get_tpu_info().vmem_capacity_bytes)
    except Exception:
        cap = 64 << 20  # conservative (v7x-sized) default if the query fails
    return int(cap * 0.85)


def _pick_block_b(B, F, H, budget_bytes):
    """Largest multiple-of-8 batch tile that (a) divides B, (b) fits the VMEM
    budget, (c) leaves >= 2 grid steps when possible (DMA pipelining + 2-TC
    sharding on v7x)."""
    F_pad = _round_up(max(F, 1), 128)
    H_pad = _round_up(max(H, 1), 128)

    # Batch-independent VMEM: weights budgeted at worst-case 2x (double-
    # buffered fallback path) + sublane/lane-padded bias rows + slack.
    const = 2 * 2 * (F_pad * H_pad + H_pad * H_pad)          # W1 + W2 (bf16)
    const += 4 * 8 * H_pad * 4 + (4 << 20)                   # b1/b2/w3/b3 + slack

    # Per-batch-row VMEM: bf16 x tile (2 bufs) + f32 (block_b,1) out tile
    # (lane-padded to 128, 2 bufs) + f32 h1/h2/temporaries.
    per_row = 2 * F_pad * 2 + 2 * 128 * 4 + 4 * H_pad * 4

    avail = budget_bytes - const
    if avail <= 0:
        cap = 8
    else:
        cap = min(1024, avail // per_row)
    cap = max(8, (cap // 8) * 8)

    divisors = [c for c in range(8, min(cap, B) + 1, 8) if B % c == 0]
    if not divisors:
        return B                      # tiny / non-multiple-of-8 batch: one block
    blk = max(divisors)
    if blk == B and B >= 16 and (B // 2) % 8 == 0:
        blk = B // 2                  # guarantee >= 2 grid steps
    return blk


# ----------------------------------------------------------------------------
# Wrapper
# ----------------------------------------------------------------------------
def adversarial_network_forward(x, params, *, block_b=None):
    """x: (B, in_feature) f32 or bf16.  params from init_params.  Returns (B, 1) f32."""
    w1, b1, w2, b2, w3, b3 = params
    B, F = x.shape
    H = w1.shape[1]
    assert w1.shape == (F, H) and w2.shape == (H, H)
    assert w3.shape == (1, H) and b3.shape == (1, 1)

    # bf16 input path: halves the dominant HBM stream into the kernel and
    # removes the per-tile f32->bf16 pack on the VPU (no-op if already bf16).
    x = x.astype(jnp.bfloat16)

    budget = _vmem_budget_bytes()
    if block_b is None:
        block_b = _pick_block_b(B, F, H, budget)
    assert B % block_b == 0, "block_b must divide the batch"
    assert block_b % 8 == 0 or block_b == B, \
        "block_b must be a multiple of 8 (sublane tiling) or the full batch"
    grid = (B // block_b,)

    # VMEM limit: generous over-estimate of the footprint, clamped to the same
    # headroomed budget (never the full physical VMEM on v7x).
    F_pad, H_pad = _round_up(F, 128), _round_up(H, 128)
    est = (2 * 2 * (F_pad * H_pad + H_pad * H_pad)     # W1/W2 bf16, worst-case 2 bufs
           + 4 * 8 * H_pad * 4                         # b1/b2/w3/b3 padded rows
           + 2 * block_b * F_pad * 2                   # x tile, double buffered
           + 2 * block_b * 128 * 4                     # (block_b,1) out, lane padded
           + 4 * block_b * H_pad * 4)                  # h1/h2/temporaries
    vmem_limit = int(min(max(2 * est, 32 << 20), budget))

    if _single_buffered_constants_supported():
        # Constant index_map -> double-buffering the weights is dead VMEM.
        const_spec = lambda shape: pl.BlockSpec(
            shape, lambda i: (0, 0), pipeline_mode=pl.Buffered(1))
    else:
        const_spec = lambda shape: pl.BlockSpec(shape, lambda i: (0, 0))

    # TODO(synk): if profiling shows exposed x DMA (large F, small H ->
    #             mem-bound per step), bump the x spec to pl.Buffered(3).
    call = pl.pallas_call(
        _adv_kernel,
        out_shape=jax.ShapeDtypeStruct((B, 1), jnp.float32),
        grid_spec=pltpu.PrefetchScalarGridSpec(
            num_scalar_prefetch=0,
            grid=grid,
            in_specs=[
                pl.BlockSpec((block_b, F), lambda i: (i, 0)),   # x batch tile (bf16)
                const_spec((F, H)),                             # W1 (bf16)
                const_spec((1, H)),                             # b1 (f32)
                const_spec((H, H)),                             # W2 (bf16)
                const_spec((1, H)),                             # b2 (f32)
                const_spec((1, H)),                             # W3 row (f32)
                const_spec((1, 1)),                             # b3 scalar
            ],
            out_specs=pl.BlockSpec((block_b, 1), lambda i: (i, 0)),
        ),
        compiler_params=pltpu.CompilerParams(
            dimension_semantics=("parallel",),
            vmem_limit_bytes=vmem_limit,
        ),
    )
    return call(x, w1, b1, w2, b2, w3, b3)


# ----------------------------------------------------------------------------
# Params + pure-JAX reference
# ----------------------------------------------------------------------------
def init_params(key, in_feature, hidden_size):
    """Xavier-normal weights (matches init_weights for Linear), zero biases.
    W1/W2 stored in bf16 for native MXU rate + half the HBM/VMEM traffic;
    W3 kept as an f32 (1, H) row for the VPU layer-3 reduction."""
    k1, k2, k3 = jax.random.split(key, 3)

    def xavier_normal(k, fan_in, fan_out):
        std = jnp.sqrt(2.0 / (fan_in + fan_out))
        return (std * jax.random.normal(k, (fan_in, fan_out))).astype(jnp.float32)

    w1 = xavier_normal(k1, in_feature, hidden_size).astype(jnp.bfloat16)
    b1 = jnp.zeros((1, hidden_size), jnp.float32)
    w2 = xavier_normal(k2, hidden_size, hidden_size).astype(jnp.bfloat16)
    b2 = jnp.zeros((1, hidden_size), jnp.float32)
    w3 = xavier_normal(k3, hidden_size, 1).reshape(1, hidden_size).astype(jnp.float32)
    b3 = jnp.zeros((1, 1), jnp.float32)
    return (w1, b1, w2, b2, w3, b3)


def _reference_forward(x, params):
    """Pure-JAX reference with the same precision choices as the kernel
    (bf16 matmul operands, f32 accumulation).  Note: the original PyTorch
    module is f32 end-to-end; bf16 operands add ~1e-2-level relative error
    vs that, acceptable for a domain discriminator."""
    w1, b1, w2, b2, w3, b3 = params
    xb = x.astype(jnp.bfloat16)
    h1 = jnp.maximum(jnp.dot(xb, w1, preferred_element_type=jnp.float32) + b1, 0.0)
    h2 = jnp.maximum(jnp.dot(h1.astype(jnp.bfloat16), w2,
                             preferred_element_type=jnp.float32) + b2, 0.0)
    logit = jnp.sum(h2 * w3, axis=-1, keepdims=True) + b3[0, 0]
    return jax.nn.sigmoid(logit)


if __name__ == "__main__":
    B, IN_FEATURE, HIDDEN = 8, 32, 32

    key = jax.random.PRNGKey(0)
    kx, kp = jax.random.split(key)

    x = jax.random.normal(kx, (B, IN_FEATURE), dtype=jnp.float32)
    params = init_params(kp, IN_FEATURE, HIDDEN)

    y = adversarial_network_forward(x, params)
    y = jax.block_until_ready(y)

    y_ref = _reference_forward(x, params)
    assert y.shape == (B, 1)
    assert jnp.allclose(y, y_ref, atol=2e-3, rtol=2e-3), "mismatch vs reference"

    print("KERNEL_OK")
</pallas_src>

<mosaic_0001>
module attributes {stable_mosaic.version = 11 : i64} {
  func.func @_probe_kernel(%arg0: i32, %arg1: memref<8x128xf32, #tpu.memory_space<vmem>>, %arg2: memref<8x128xf32, #tpu.memory_space<vmem>>) attributes {dimension_semantics = [#tpu.dimension_semantics<arbitrary>], iteration_bounds = array<i64: 2>, scalar_prefetch = 0 : i64, scratch_operands = 0 : i64, tpu.core_type = #tpu.core_type<tc>, window_params = [{pipeline_mode = #tpu.pipeline_mode<synchronous>, transform_indices = @transform_0, window_bounds = array<i64: 8, 128>}, {transform_indices = @transform_1, window_bounds = array<i64: 8, 128>}]} {
    %c0 = arith.constant 0 : index
    %c0_0 = arith.constant 0 : index
    %0 = vector.load %arg1[%c0, %c0_0] : memref<8x128xf32, #tpu.memory_space<vmem>>, vector<8x128xf32>
    %c0_1 = arith.constant 0 : index
    %c0_2 = arith.constant 0 : index
    %1 = vector.load %arg2[%c0_1, %c0_2] : memref<8x128xf32, #tpu.memory_space<vmem>>, vector<8x128xf32>
    tpu.vector_store %arg2[%c0_1, %c0_2], %0 {strides = array<i32>} : memref<8x128xf32, #tpu.memory_space<vmem>>, vector<8x128xf32>,
    return
  }
  func.func @transform_0(%arg0: i32) -> (i32, i32) {
    %c0_i32 = arith.constant 0 : i32
    %c0_i32_0 = arith.constant 0 : i32
    %c0_i32_1 = arith.constant 0 : i32
    return %c0_i32, %c0_i32_0 : i32, i32
  }
  func.func @transform_1(%arg0: i32) -> (i32, i32) {
    %c0_i32 = arith.constant 0 : i32
    %c0_i32_0 = arith.constant 0 : i32
    return %arg0, %c0_i32 : i32, i32
  }
}

module attributes {stable_mosaic.version = 11 : i64} {
  func.func @_adv_kernel(%arg0: i32, %arg1: memref<8x32xbf16, #tpu.memory_space<vmem>>, %arg2: memref<32x32xbf16, #tpu.memory_space<vmem>>, %arg3: memref<1x32xf32, #tpu.memory_space<vmem>>, %arg4: memref<32x32xbf16, #tpu.memory_space<vmem>>, %arg5: memref<1x32xf32, #tpu.memory_space<vmem>>, %arg6: memref<1x32xf32, #tpu.memory_space<vmem>>, %arg7: memref<1x1xf32, #tpu.memory_space<vmem>>, %arg8: memref<8x1xf32, #tpu.memory_space<vmem>>) attributes {dimension_semantics = [#tpu.dimension_semantics<parallel>], iteration_bounds = array<i64: 1>, scalar_prefetch = 0 : i64, scratch_operands = 0 : i64, tpu.core_type = #tpu.core_type<tc>, window_params = [{transform_indices = @transform_0, window_bounds = array<i64: 8, 32>}, {pipeline_mode = #tpu.pipeline_mode<synchronous>, transform_indices = @transform_1, window_bounds = array<i64: 32, 32>}, {pipeline_mode = #tpu.pipeline_mode<synchronous>, transform_indices = @transform_2, window_bounds = array<i64: 1, 32>}, {pipeline_mode = #tpu.pipeline_mode<synchronous>, transform_indices = @transform_3, window_bounds = array<i64: 32, 32>}, {pipeline_mode = #tpu.pipeline_mode<synchronous>, transform_indices = @transform_4, window_bounds = array<i64: 1, 32>}, {pipeline_mode = #tpu.pipeline_mode<synchronous>, transform_indices = @transform_5, window_bounds = array<i64: 1, 32>}, {pipeline_mode = #tpu.pipeline_mode<synchronous>, transform_indices = @transform_6, window_bounds = array<i64: 1, 1>}, {transform_indices = @transform_7, window_bounds = array<i64: 8, 1>}]} {
    %c0 = arith.constant 0 : index
    %c0_0 = arith.constant 0 : index
    %0 = vector.load %arg1[%c0, %c0_0] : memref<8x32xbf16, #tpu.memory_space<vmem>>, vector<8x32xbf16>
    %c0_1 = arith.constant 0 : index
    %c0_2 = arith.constant 0 : index
    %1 = vector.load %arg2[%c0_1, %c0_2] : memref<32x32xbf16, #tpu.memory_space<vmem>>, vector<32x32xbf16>
    %cst = arith.constant dense<0.000000e+00> : vector<8x32xf32>
    %2 = tpu.matmul %0, %1, %cst {dimension_numbers = #tpu.dot_dimension_numbers<[1], [0], [0], [1], [0, 0, 1, 1], [], []>} : vector<8x32xbf16>, vector<32x32xbf16>, vector<8x32xf32> -> vector<8x32xf32>
    %c0_3 = arith.constant 0 : index
    %c0_4 = arith.constant 0 : index
    %3 = vector.load %arg3[%c0_3, %c0_4] : memref<1x32xf32, #tpu.memory_space<vmem>>, vector<1x32xf32>
    %4 = vector.broadcast %3 : vector<1x32xf32> to vector<8x32xf32>
    %5 = arith.addf %2, %4 : vector<8x32xf32>
    %cst_5 = arith.constant 0.000000e+00 : f32
    %6 = vector.broadcast %cst_5 : f32 to vector<8x32xf32>
    %7 = arith.maximumf %5, %6 : vector<8x32xf32>
    %8 = arith.truncf %7 : vector<8x32xf32> to vector<8x32xbf16>
    %c0_6 = arith.constant 0 : index
    %c0_7 = arith.constant 0 : index
    %9 = vector.load %arg4[%c0_6, %c0_7] : memref<32x32xbf16, #tpu.memory_space<vmem>>, vector<32x32xbf16>
    %cst_8 = arith.constant dense<0.000000e+00> : vector<8x32xf32>
    %10 = tpu.matmul %8, %9, %cst_8 {dimension_numbers = #tpu.dot_dimension_numbers<[1], [0], [0], [1], [0, 0, 1, 1], [], []>} : vector<8x32xbf16>, vector<32x32xbf16>, vector<8x32xf32> -> vector<8x32xf32>
    %c0_9 = arith.constant 0 : index
    %c0_10 = arith.constant 0 : index
    %11 = vector.load %arg5[%c0_9, %c0_10] : memref<1x32xf32, #tpu.memory_space<vmem>>, vector<1x32xf32>
    %12 = vector.broadcast %11 : vector<1x32xf32> to vector<8x32xf32>
    %13 = arith.addf %10, %12 : vector<8x32xf32>
    %cst_11 = arith.constant 0.000000e+00 : f32
    %14 = vector.broadcast %cst_11 : f32 to vector<8x32xf32>
    %15 = arith.maximumf %13, %14 : vector<8x32xf32>
    %c0_12 = arith.constant 0 : index
    %c0_13 = arith.constant 0 : index
    %16 = vector.load %arg6[%c0_12, %c0_13] : memref<1x32xf32, #tpu.memory_space<vmem>>, vector<1x32xf32>
    %17 = vector.broadcast %16 : vector<1x32xf32> to vector<8x32xf32>
    %18 = arith.mulf %15, %17 : vector<8x32xf32>
    %cst_14 = arith.constant dense<0.000000e+00> : vector<8xf32>
    %19 = vector.multi_reduction <add>, %18, %cst_14 [1] : vector<8x32xf32> to vector<8xf32>
    %20 = vector.shape_cast %19 : vector<8xf32> to vector<8x1xf32>
    %c0_15 = arith.constant 0 : index
    %c0_16 = arith.constant 0 : index
    %21 = vector.load %arg7[%c0_15, %c0_16] : memref<1x1xf32, #tpu.memory_space<vmem>>, vector<1x1xf32>
    %22 = vector.extract %21[0, 0] : f32 from vector<1x1xf32>
    %23 = vector.broadcast %22 : f32 to vector<8x1xf32>
    %24 = arith.addf %20, %23 : vector<8x1xf32>
    %cst_17 = arith.constant 5.000000e-01 : f32
    %25 = vector.broadcast %cst_17 : f32 to vector<8x1xf32>
    %26 = arith.mulf %25, %24 : vector<8x1xf32>
    %27 = math.tanh %26 : vector<8x1xf32>
    %cst_18 = arith.constant 1.000000e+00 : f32
    %28 = vector.broadcast %cst_18 : f32 to vector<8x1xf32>
    %29 = arith.addf %27, %28 : vector<8x1xf32>
    %cst_19 = arith.constant 5.000000e-01 : f32
    %30 = vector.broadcast %cst_19 : f32 to vector<8x1xf32>
    %31 = arith.mulf %30, %29 : vector<8x1xf32>
    %c0_20 = arith.constant 0 : index
    %c0_21 = arith.constant 0 : index
    %32 = vector.load %arg8[%c0_20, %c0_21] : memref<8x1xf32, #tpu.memory_space<vmem>>, vector<8x1xf32>
    tpu.vector_store %arg8[%c0_20, %c0_21], %31 {strides = array<i32>} : memref<8x1xf32, #tpu.memory_space<vmem>>, vector<8x1xf32>,
    return
  }
  func.func @transform_0(%arg0: i32) -> (i32, i32) {
    %c0_i32 = arith.constant 0 : i32
    %c0_i32_0 = arith.constant 0 : i32
    return %arg0, %c0_i32 : i32, i32
  }
  func.func @transform_1(%arg0: i32) -> (i32, i32) {
    %c0_i32 = arith.constant 0 : i32
    %c0_i32_0 = arith.constant 0 : i32
    %c0_i32_1 = arith.constant 0 : i32
    return %c0_i32, %c0_i32_0 : i32, i32
  }
  func.func @transform_2(%arg0: i32) -> (i32, i32) {
    %c0_i32 = arith.constant 0 : i32
    %c0_i32_0 = arith.constant 0 : i32
    %c0_i32_1 = arith.constant 0 : i32
    return %c0_i32, %c0_i32_0 : i32, i32
  }
  func.func @transform_3(%arg0: i32) -> (i32, i32) {
    %c0_i32 = arith.constant 0 : i32
    %c0_i32_0 = arith.constant 0 : i32
    %c0_i32_1 = arith.constant 0 : i32
    return %c0_i32, %c0_i32_0 : i32, i32
  }
  func.func @transform_4(%arg0: i32) -> (i32, i32) {
    %c0_i32 = arith.constant 0 : i32
    %c0_i32_0 = arith.constant 0 : i32
    %c0_i32_1 = arith.constant 0 : i32
    return %c0_i32, %c0_i32_0 : i32, i32
  }
  func.func @transform_5(%arg0: i32) -> (i32, i32) {
    %c0_i32 = arith.constant 0 : i32
    %c0_i32_0 = arith.constant 0 : i32
    %c0_i32_1 = arith.constant 0 : i32
    return %c0_i32, %c0_i32_0 : i32, i32
  }
  func.func @transform_6(%arg0: i32) -> (i32, i32) {
    %c0_i32 = arith.constant 0 : i32
    %c0_i32_0 = arith.constant 0 : i32
    %c0_i32_1 = arith.constant 0 : i32
    return %c0_i32, %c0_i32_0 : i32, i32
  }
  func.func @transform_7(%arg0: i32) -> (i32, i32) {
    %c0_i32 = arith.constant 0 : i32
    %c0_i32_0 = arith.constant 0 : i32
    return %arg0, %c0_i32 : i32, i32
  }
}

</mosaic_0001>

<llo_original>
// kernel: tpu_custom_call.1
$region0: #{tpu_custom_call.1}
  #allocation0 [shape = 'u32[]', space=smem, size = 0x4, offset = 0x4, fixed_abs, tag = 'smem constant byte address 0x4 - core index']
  #allocation1 [shape = 'u32[144,128]{1,0:T(1,128)}', space=vmem, size = 0x12000, scoped, tag = 'internal scratch']
  %s0 = inlined_call_operand.hbm [shape: f32[8,128], index: 0, kind: input, shape index: {}]
  %s1 = inlined_call_operand.hbm [shape: f32[16,128], index: 1, kind: output, shape index: {}]
  %s2 = sld [smem:[#allocation0]]
  $region41: #{tpu_custom_call.1} parent=0
    _
  %s4 = ssub.s32 1, %s2
  %s5 = scalar_select 0, %s4, %s2
  $region1: #{tpu_custom_call.1} parent=0
    #allocation2 [shape = 'u8[4096]{0}', space=vmem, size = 0x1000, scoped, tag = 'input window, operand 0, single buffered']
    #allocation3 [shape = 's32[2]{0}', space=sflag, size = 0x8, scoped, tag = 'scoped memory for tpu_custom_call.1']
    #allocation4 [shape = 's32[2]{0}', space=sflag, size = 0x8, scoped, tag = 'scoped memory for tpu_custom_call.1']
    #allocation5 [shape = 'u8[8192]{0}', space=vmem, size = 0x2000, scoped, tag = 'output window, operand 0']
    %6 = vsyncpa [#allocation3], 0
    %7 = vsyncpa [#allocation4], 0
    %s8 = scalar_lea.sflag [#allocation4], 1
    %9 = vsyncpa %s8, 0
    loop: start=0, step=1, limit=4
    $region2: #{tpu_custom_call.1} parent=1 // loop_pre_header
      _
    $region3: #{tpu_custom_call.1} parent=1 // loop_header
      %s11 = sphi 0, %s15
      %p12 = scmp.ge.s32.totalorder %s11, 4
      %s19 = sphi 0, %s19
      %s21 = sphi 0, %s19
      %s22 = sphi 0, %s21
      %s36 = sphi 0, %s22
      %s42 = sphi 0, %s44
      %s45 = sphi 0, %s42
      %s46 = sphi 0, %s45
      %s62 = sphi 0, %s46
    $region4: #{tpu_custom_call.1} parent=1 // loop_header_branch
      %14 = sbr.rel (%p12) target = $region8
    $region5: #{tpu_custom_call.1} parent=1 // loop_body
      %s16 = ssub.s32 %s11, 1
      %s17 = ssub.s32 %s11, 2
      %s18 = sadd.s32 %s11, 1
      %s20 = sadd.s32 %s19, 1
      %p23 = scmp.eq.s32.totalorder %s11, 1
      %p24 = scmp.ne.s32.totalorder %s19, %s21
      %p25 = scmp.eq.s32.totalorder %s11, 0
      %p26 = por %p24, %p25
      %p27 = scmp.ne.s32.totalorder %s19, %s21
      %p28 = scmp.eq.s32.totalorder %s16, 1
      %p29 = por %p27, %p28
      %p30 = scmp.ne.s32.totalorder %s21, %s22
      %p31 = scmp.eq.s32.totalorder %s16, 0
      %p32 = por %p30, %p31
      %p33 = scmp.ne.s32.totalorder %s21, %s22
      %p34 = scmp.eq.s32.totalorder %s17, 1
      %p35 = por %p33, %p34
      %p37 = scmp.ne.s32.totalorder %s22, %s36
      %p38 = scmp.eq.s32.totalorder %s17, 0
      %p39 = por %p37, %p38
      %s40 = ssub.s32 %s11, %s18
      %p41 = scmp.eq.s32.totalorder %s40, 0
      %s43 = sadd.s32 %s42, 1
      %s44 = scalar_select %p41, %s42, %s43
      %p47 = pneg %p41
      %p48 = scmp.eq.s32.totalorder %s11, 1
      %p49 = por %p47, %p48
      %p50 = scmp.ne.s32.totalorder %s42, %s45
      %p51 = scmp.eq.s32.totalorder %s11, 0
      %p52 = por %p50, %p51
      %p53 = scmp.ne.s32.totalorder %s42, %s45
      %p54 = scmp.eq.s32.totalorder %s16, 1
      %p55 = por %p53, %p54
      %p56 = scmp.ne.s32.totalorder %s45, %s46
      %p57 = scmp.eq.s32.totalorder %s16, 0
      %p58 = por %p56, %p57
      %p59 = scmp.ne.s32.totalorder %s45, %s46
      %p60 = scmp.eq.s32.totalorder %s17, 1
      %p61 = por %p59, %p60
      %p63 = scmp.ne.s32.totalorder %s46, %s62
      %p64 = scmp.eq.s32.totalorder %s17, 0
      %p65 = por %p63, %p64
      %p66 = scmp.le.s32.totalorder 1, %s11
      %p67 = scmp.lt.s32.totalorder %s11, 3
      %p68 = pnand %p66, %p67
      %p69 = pneg %p68
      // Predicated region
      $region9: #{tpu_custom_call.1} parent=5 // pred_check
        _
      $region10: #{tpu_custom_call.1} parent=5 // pred_check_branch
        %71 = sbr.rel (%p68) target = $region12
      $region11: #{tpu_custom_call.1} parent=5 // pred_region
        %s72 = ssub.s32 %s11, 1
        // Predicated region
        $region13: #{tpu_custom_call.1} parent=11 // pred_check
          %p73 = pneg %p32
        $region14: #{tpu_custom_call.1} parent=11 // pred_check_branch
          %75 = sbr.rel (%p73) target = $region16
        $region15: #{tpu_custom_call.1} parent=11 // pred_region
          %s77 = ssub.s32 128, 128
          %78 = vsyncadd [#allocation3], %s77
          %s80 = sshll.u32 [#allocation2], 4
          %s81 = int_to_ptr.vmem [resolvable:$true] %s80
          %83 = dma.hbm_to_vmem [thread:$0]  %s0, 128, %s81, [#allocation3]
        $region16: #{tpu_custom_call.1} parent=11 // pred_fallthru
          _
      $region12: #{tpu_custom_call.1} parent=5 // pred_fallthru
        _
      %p84 = scmp.lt.s32.totalorder %s11, 2
      // Predicated region
      $region17: #{tpu_custom_call.1} parent=5 // pred_check
        %p85 = pneg %p84
      $region18: #{tpu_custom_call.1} parent=5 // pred_check_branch
        %87 = sbr.rel (%p85) target = $region20
      $region19: #{tpu_custom_call.1} parent=5 // pred_region
        _
      $region20: #{tpu_custom_call.1} parent=5 // pred_fallthru
        _
      %p88 = scmp.le.s32.totalorder 1, %s11
      %p89 = scmp.lt.s32.totalorder %s11, 3
      %p90 = pnand %p88, %p89
      %p91 = pneg %p90
      // Predicated region
      $region21: #{tpu_custom_call.1} parent=5 // pred_check
        _
      $region22: #{tpu_custom_call.1} parent=5 // pred_check_branch
        %93 = sbr.rel (%p90) target = $region24
      $region23: #{tpu_custom_call.1} parent=5 // pred_region
        %s94 = ssub.s32 %s11, 1
        // Predicated region
        $region25: #{tpu_custom_call.1} parent=23 // pred_check
          %p95 = pneg %p32
        $region26: #{tpu_custom_call.1} parent=23 // pred_check_branch
          %97 = sbr.rel (%p95) target = $region28
        $region27: #{tpu_custom_call.1} parent=23 // pred_region
          %98 = dma.done [#allocation3], 128
        $region28: #{tpu_custom_call.1} parent=23 // pred_fallthru
          _
        %p99 = pneg %p32
        %p100 = pneg %p29
        %p101 = pneg %p58
        %p102 = pneg %p55
        %s103 = sand.u32 %s45, 1
        %s104 = scalar_lea.sflag [#allocation4], %s103
        %s105 = sand.u32 %s45, 1
        %s106 = smul.addr %s105, 8
        %s107 = scalar_lea.vmem [#allocation5], %s106
        %v108 = vld [vmem:[#allocation2] sm:$0xff]
        %109 = vst [vmem:[%s107] sm:$0xff] %v108
        %s110 = sand.u32 %s45, 1
        %s111 = scalar_lea.sflag [#allocation4], %s110
        %s112 = sand.u32 %s45, 1
        %s113 = smul.addr %s112, 8
        %s114 = scalar_lea.vmem [#allocation5], %s113
        // Predicated region
        $region29: #{tpu_custom_call.1} parent=23 // pred_check
          %p115 = pneg %p55
        $region30: #{tpu_custom_call.1} parent=23 // pred_check_branch
          %117 = sbr.rel (%p115) target = $region32
        $region31: #{tpu_custom_call.1} parent=23 // pred_region
          %s119 = ssub.s32 128, 128
          %120 = vsyncadd %s111, %s119
          %s121 = smul.addr %s16, 128
          %s122 = scalar_lea.hbm %s1, %s121
          %s124 = sshll.u32 %s114, 4
          %s125 = int_to_ptr.vmem [resolvable:$true] %s124
          %127 = dma.vmem_to_hbm [thread:$0]  %s125, 128, %s122, %s111
        $region32: #{tpu_custom_call.1} parent=23 // pred_fallthru
          _
      $region24: #{tpu_custom_call.1} parent=5 // pred_fallthru
        _
      %p128 = scmp.le.s32.totalorder 2, %s11
      // Predicated region
      $region33: #{tpu_custom_call.1} parent=5 // pred_check
        %p129 = pneg %p128
      $region34: #{tpu_custom_call.1} parent=5 // pred_check_branch
        %131 = sbr.rel (%p129) target = $region36
      $region35: #{tpu_custom_call.1} parent=5 // pred_region
        %s132 = ssub.s32 %s11, 2
        // Predicated region
        $region37: #{tpu_custom_call.1} parent=35 // pred_check
          %p133 = pneg %p61
        $region38: #{tpu_custom_call.1} parent=35 // pred_check_branch
          %135 = sbr.rel (%p133) target = $region40
        $region39: #{tpu_custom_call.1} parent=35 // pred_region
          %s136 = sand.u32 %s46, 1
          %s137 = scalar_lea.sflag [#allocation4], %s136
          %s138 = sand.u32 %s46, 1
          %s139 = smul.addr %s138, 8
          %s140 = scalar_lea.vmem [#allocation5], %s139
          %141 = dma.done %s137, 128
        $region40: #{tpu_custom_call.1} parent=35 // pred_fallthru
          _
      $region36: #{tpu_custom_call.1} parent=5 // pred_fallthru
        _
    $region6: #{tpu_custom_call.1} parent=1 // loop_footer
      %s15 = sadd.s32 1, %s11
    $region7: #{tpu_custom_call.1} parent=1 // loop_footer_branch
      %10 = sbr.rel target = $region3
    $region8: #{tpu_custom_call.1} parent=1 // loop_exit
      _
    %142 = vsyncpa [#allocation3], 1
    %s143 = scalar_lea.sflag [#allocation3], 1
    %144 = vsyncpa %s143, 1
    %145 = vsyncpa [#allocation4], 1
    %s146 = scalar_lea.sflag [#allocation4], 1
    %147 = vsyncpa %s146, 1

// kernel: tpu_custom_call.1
$region0: #{tpu_custom_call.1}
  #allocation0 [shape = 'u32[]', space=smem, size = 0x4, offset = 0x4, fixed_abs, tag = 'smem constant byte address 0x4 - core index']
  #allocation1 [shape = 'u32[144,128]{1,0:T(1,128)}', space=vmem, size = 0x12000, scoped, tag = 'internal scratch']
  #allocation2 [shape = 'f32[1,1]{1,0:T(1,128)S(1)}', space=vmem, size = 0x200, scoped, tag = 'scoped memory for tpu_custom_call.1']
  %s0 = inlined_call_operand.hbm [shape: bf16[8,32], index: 0, kind: input, shape index: {}]
  %s1 = inlined_call_operand.hbm [shape: bf16[32,32], index: 1, kind: input, shape index: {}]
  %s2 = inlined_call_operand.vmem [shape: f32[1,32], index: 2, kind: input, shape index: {}]
  %s3 = inlined_call_operand.hbm [shape: bf16[32,32], index: 3, kind: input, shape index: {}]
  %s4 = inlined_call_operand.vmem [shape: f32[1,32], index: 4, kind: input, shape index: {}]
  %s5 = inlined_call_operand.vmem [shape: f32[1,32], index: 5, kind: input, shape index: {}]
  %s6 = inlined_call_operand.<no memory space> [shape: f32[1,1], index: 6, kind: input, shape index: {}]
  %s7 = inlined_call_operand.vmem [shape: f32[8,1], index: 7, kind: output, shape index: {}]
  %s8 = sld [smem:[#allocation0]]
  $region50: #{tpu_custom_call.1} parent=0
    _
  %s10 = ssub.s32 1, %s8
  %s11 = scalar_select 0, %s10, %s8
  %v12 = vstv %s6
  %13 = vst [vmem:[#allocation2] sm:$0x1] %v12
  $region1: #{tpu_custom_call.1} parent=0
    #allocation3 [shape = 'u8[2048]{0}', space=vmem, size = 0x800, scoped, tag = 'input window, operand 0, single buffered']
    #allocation4 [shape = 's32[1]{0}', space=sflag, size = 0x4, scoped, tag = 'scoped memory for tpu_custom_call.1']
    #allocation5 [shape = 'u8[8192]{0}', space=vmem, size = 0x2000, scoped, tag = 'input window, operand 1, single buffered']
    #allocation6 [shape = 's32[1]{0}', space=sflag, size = 0x4, scoped, tag = 'scoped memory for tpu_custom_call.1']
    #allocation7 [shape = 'u8[8192]{0}', space=vmem, size = 0x2000, scoped, tag = 'input window, operand 3, single buffered']
    %14 = vsyncpa [#allocation4], 0
    %15 = vsyncpa [#allocation6], 0
    // Predicated region
    $region2: #{tpu_custom_call.1} parent=1 // pred_check
      _
    $region3: #{tpu_custom_call.1} parent=1 // pred_check_branch
      %17 = sbr.rel (0) target = $region5
    $region4: #{tpu_custom_call.1} parent=1 // pred_region
      %s19 = ssub.s32 64, 64
      %20 = vsyncadd [#allocation4], %s19
      %s22 = sshll.u32 [#allocation3], 4
      %s23 = int_to_ptr.vmem [resolvable:$true] %s22
      %25 = dma.hbm_to_vmem [thread:$0]  %s0, 64, %s23, [#allocation4]
    $region5: #{tpu_custom_call.1} parent=1 // pred_fallthru
      _
    // Predicated region
    $region6: #{tpu_custom_call.1} parent=1 // pred_check
      _
    $region7: #{tpu_custom_call.1} parent=1 // pred_check_branch
      %27 = sbr.rel (0) target = $region9
    $region8: #{tpu_custom_call.1} parent=1 // pred_region
      %s29 = ssub.s32 256, 256
      %30 = vsyncadd [#allocation6], %s29
      %s31 = sshll.u32 [#allocation5], 4
      %s32 = int_to_ptr.vmem [resolvable:$true] %s31
      %37 = dma.hbm_to_vmem [thread:$0]  %s1, 256, %s32, [#allocation6], 64, 64, 4
    $region9: #{tpu_custom_call.1} parent=1 // pred_fallthru
      _
    // Predicated region
    $region10: #{tpu_custom_call.1} parent=1 // pred_check
      _
    $region11: #{tpu_custom_call.1} parent=1 // pred_check_branch
      %39 = sbr.rel (0) target = $region13
    $region12: #{tpu_custom_call.1} parent=1 // pred_region
      _
    $region13: #{tpu_custom_call.1} parent=1 // pred_fallthru
      _
    // Predicated region
    $region14: #{tpu_custom_call.1} parent=1 // pred_check
      _
    $region15: #{tpu_custom_call.1} parent=1 // pred_check_branch
      %41 = sbr.rel (0) target = $region17
    $region16: #{tpu_custom_call.1} parent=1 // pred_region
      %s43 = ssub.s32 256, 256
      %44 = vsyncadd [#allocation6], %s43
      %s45 = sshll.u32 [#allocation7], 4
      %s46 = int_to_ptr.vmem [resolvable:$true] %s45
      %51 = dma.hbm_to_vmem [thread:$0]  %s3, 256, %s46, [#allocation6], 64, 64, 4
    $region17: #{tpu_custom_call.1} parent=1 // pred_fallthru
      _
    // Predicated region
    $region18: #{tpu_custom_call.1} parent=1 // pred_check
      _
    $region19: #{tpu_custom_call.1} parent=1 // pred_check_branch
      %53 = sbr.rel (0) target = $region21
    $region20: #{tpu_custom_call.1} parent=1 // pred_region
      _
    $region21: #{tpu_custom_call.1} parent=1 // pred_fallthru
      _
    // Predicated region
    $region22: #{tpu_custom_call.1} parent=1 // pred_check
      _
    $region23: #{tpu_custom_call.1} parent=1 // pred_check_branch
      %55 = sbr.rel (0) target = $region25
    $region24: #{tpu_custom_call.1} parent=1 // pred_region
      _
    $region25: #{tpu_custom_call.1} parent=1 // pred_fallthru
      _
    // Predicated region
    $region26: #{tpu_custom_call.1} parent=1 // pred_check
      _
    $region27: #{tpu_custom_call.1} parent=1 // pred_check_branch
      %57 = sbr.rel (0) target = $region29
    $region28: #{tpu_custom_call.1} parent=1 // pred_region
      _
    $region29: #{tpu_custom_call.1} parent=1 // pred_fallthru
      _
    // Predicated region
    $region30: #{tpu_custom_call.1} parent=1 // pred_check
      _
    $region31: #{tpu_custom_call.1} parent=1 // pred_check_branch
      %59 = sbr.rel (0) target = $region33
    $region32: #{tpu_custom_call.1} parent=1 // pred_region
      %60 = dma.done [#allocation4], 64
    $region33: #{tpu_custom_call.1} parent=1 // pred_fallthru
      _
    // Predicated region
    $region34: #{tpu_custom_call.1} parent=1 // pred_check
      _
    $region35: #{tpu_custom_call.1} parent=1 // pred_check_branch
      %62 = sbr.rel (0) target = $region37
    $region36: #{tpu_custom_call.1} parent=1 // pred_region
      %63 = dma.done [#allocation6], 256
    $region37: #{tpu_custom_call.1} parent=1 // pred_fallthru
      _
    // Predicated region
    $region38: #{tpu_custom_call.1} parent=1 // pred_check
      _
    $region39: #{tpu_custom_call.1} parent=1 // pred_check_branch
      %65 = sbr.rel (0) target = $region41
    $region40: #{tpu_custom_call.1} parent=1 // pred_region
      %66 = dma.done [#allocation6], 256
    $region41: #{tpu_custom_call.1} parent=1 // pred_fallthru
      _
    %v68 = vld [vmem:[#allocation3] sm:$0xf]
    %v69 = vld [vmem:[#allocation5] sm:$0xf]
    %v70 = vld [vmem:[#allocation5 + $0x4] sm:$0xf]
    %v71 = vld [vmem:[#allocation5 + $0x8] sm:$0xf]
    %v72 = vld [vmem:[#allocation5 + $0xc] sm:$0xf]
    %v73 = vld [vmem:[%s2] sm:$0x1]
    %v75 = vlaneseq
    %v76 = vshrl.u32 %v75, 7
    %v77 = vsub.s32 0, %v76
    %v78 = vrot.slane %v73, %v77
    %v84 = vunpack.c.l.b16 %v69
    %v85 = vunpack.c.l.b16 %v70
    %v86 = vunpack.c.l.b16 %v71
    %v87 = vunpack.c.l.b16 %v72
    %v88 = vpack.c.b16 %v85, %v84
    %v89 = vpack.c.b16 %v87, %v86
    %vm92 = vcmask 261120
    %v94 = vsel %vm92, %v68, 0
    %96 = vmatprep.subr.bf16.mxu0 0
    %97 = vmatpush1.bf16.msra.mxu0 0
    %98 = vmatprep.subr.bf16.mxu0 0
    %99 = vmatpush1.bf16.msra.mxu0 0
    %100 = vmatprep.subr.bf16.mxu0 0
    %101 = vmatpush1.bf16.msra.mxu0 0
    %102 = vmatprep.subr.bf16.mxu0 0
    %103 = vmatpush1.bf16.msra.mxu0 0
    %104 = vmatprep.subr.bf16.mxu0 0
    %105 = vmatpush1.bf16.msra.mxu0 0
    %106 = vmatprep.subr.bf16.mxu0 0
    %107 = vmatpush1.bf16.msra.mxu0 0
    %108 = vmatprep.subr.bf16.mxu0 0
    %109 = vmatpush1.bf16.msra.mxu0 %v89
    %110 = vmatprep.subr.bf16.mxu0 0
    %111 = vmatpush1.bf16.msra.mxu0 %v88
    %112 = vmatprep.subr.bf16.mxu0 0
    %113 = vmatpush2.bf16.msra.mxu0 0
    %114 = vmatprep.subr.bf16.mxu0 0
    %115 = vmatpush2.bf16.msra.mxu0 0
    %116 = vmatprep.subr.bf16.mxu0 0
    %117 = vmatpush2.bf16.msra.mxu0 0
    %118 = vmatprep.subr.bf16.mxu0 0
    %119 = vmatpush2.bf16.msra.mxu0 0
    %120 = vmatprep.subr.bf16.mxu0 0
    %121 = vmatpush2.bf16.msra.mxu0 0
    %122 = vmatprep.subr.bf16.mxu0 0
    %123 = vmatpush2.bf16.msra.mxu0 0
    %124 = vmatprep.subr.bf16.mxu0 0
    %125 = vmatpush2.bf16.msra.mxu0 0
    %126 = vmatprep.subr.bf16.mxu0 0
    %127 = vmatpush2.bf16.msra.mxu0 0
    %128 = vmatprep.mubr.bf16.mxu0 0
    %129 = vmatmul.mubr.bf16.gmra.mxu0 %v94
    %v130 = vpop.f32.mrf.mxu0
    %v131 = vadd.f32 %v78, %v130
    %v132 = vpop.f32.mrf.mxu0
    %v133 = vpop.f32.mrf.mxu0
    %v134 = vpop.f32.mrf.mxu0
    %135 = vdwg.mxu0
    %v136 = vmax.f32 %v131, 0.0
    %v137 = vpack.c.bf16 %v136, %v136
    %v138 = vld [vmem:[#allocation7] sm:$0xf]
    %v139 = vld [vmem:[#allocation7 + $0x4] sm:$0xf]
    %v140 = vld [vmem:[#allocation7 + $0x8] sm:$0xf]
    %v141 = vld [vmem:[#allocation7 + $0xc] sm:$0xf]
    %v142 = vld [vmem:[%s4] sm:$0x1]
    %v144 = vlaneseq
    %v145 = vshrl.u32 %v144, 7
    %v146 = vsub.s32 0, %v145
    %v147 = vrot.slane %v142, %v146
    %v153 = vunpack.c.l.b16 %v138
    %v154 = vunpack.c.l.b16 %v139
    %v155 = vunpack.c.l.b16 %v140
    %v156 = vunpack.c.l.b16 %v141
    %v157 = vpack.c.b16 %v154, %v153
    %v158 = vpack.c.b16 %v156, %v155
    %v162 = vsel %vm92, %v137, 0
    %164 = vmatprep.subr.bf16.mxu0 0
    %165 = vmatpush1.bf16.msra.mxu0 0
    %166 = vmatprep.subr.bf16.mxu0 0
    %167 = vmatpush1.bf16.msra.mxu0 0
    %168 = vmatprep.subr.bf16.mxu0 0
    %169 = vmatpush1.bf16.msra.mxu0 0
    %170 = vmatprep.subr.bf16.mxu0 0
    %171 = vmatpush1.bf16.msra.mxu0 0
    %172 = vmatprep.subr.bf16.mxu0 0
    %173 = vmatpush1.bf16.msra.mxu0 0
    %174 = vmatprep.subr.bf16.mxu0 0
    %175 = vmatpush1.bf16.msra.mxu0 0
    %176 = vmatprep.subr.bf16.mxu0 0
    %177 = vmatpush1.bf16.msra.mxu0 %v158
    %178 = vmatprep.subr.bf16.mxu0 0
    %179 = vmatpush1.bf16.msra.mxu0 %v157
    %180 = vmatprep.subr.bf16.mxu0 0
    %181 = vmatpush2.bf16.msra.mxu0 0
    %182 = vmatprep.subr.bf16.mxu0 0
    %183 = vmatpush2.bf16.msra.mxu0 0
    %184 = vmatprep.subr.bf16.mxu0 0
    %185 = vmatpush2.bf16.msra.mxu0 0
    %186 = vmatprep.subr.bf16.mxu0 0
    %187 = vmatpush2.bf16.msra.mxu0 0
    %188 = vmatprep.subr.bf16.mxu0 0
    %189 = vmatpush2.bf16.msra.mxu0 0
    %190 = vmatprep.subr.bf16.mxu0 0
    %191 = vmatpush2.bf16.msra.mxu0 0
    %192 = vmatprep.subr.bf16.mxu0 0
    %193 = vmatpush2.bf16.msra.mxu0 0
    %194 = vmatprep.subr.bf16.mxu0 0
    %195 = vmatpush2.bf16.msra.mxu0 0
    %196 = vmatprep.mubr.bf16.mxu0 0
    %197 = vmatmul.mubr.bf16.gmra.mxu0 %v162
    %v198 = vpop.f32.mrf.mxu0
    %v199 = vadd.f32 %v147, %v198
    %v200 = vpop.f32.mrf.mxu0
    %v201 = vpop.f32.mrf.mxu0
    %v202 = vpop.f32.mrf.mxu0
    %203 = vdwg.mxu0
    %v204 = vmax.f32 %v199, 0.0
    %v205 = vld [vmem:[%s5] sm:$0x1]
    %v207 = vlaneseq
    %v208 = vshrl.u32 %v207, 7
    %v209 = vsub.s32 0, %v208
    %v210 = vrot.slane %v205, %v209
    %v212 = vmul.f32 %v204, %v210
    %v213 = vsel %vm92, %v212, 0.0
    %214 = vadd.xlane.f32.xlu0 %v213
    %v215 = vpop.xlane.xlu0 %214
    %v216 = vld [vmem:[#allocation2] sm:$0x1]
    %s217 = vtos %v216
    %v218 = vstv %s217
    %v219 = vadd.f32 %v215, %v218
    %v220 = vmul.f32 %v219, 0.5
    %v221 = vtanh.pop %v220
    %v222 = vadd.f32 %v221, 1.0
    %v223 = vmul.f32 %v222, 0.5
    %vm224 = vcmask 7168
    %225 = vst.msk [vmem:[%s7] sm:$0xff] %vm224, %v223
    // Predicated region
    $region42: #{tpu_custom_call.1} parent=1 // pred_check
      _
    $region43: #{tpu_custom_call.1} parent=1 // pred_check_branch
      %227 = sbr.rel (0) target = $region45
    $region44: #{tpu_custom_call.1} parent=1 // pred_region
      _
    $region45: #{tpu_custom_call.1} parent=1 // pred_fallthru
      _
    // Predicated region
    $region46: #{tpu_custom_call.1} parent=1 // pred_check
      _
    $region47: #{tpu_custom_call.1} parent=1 // pred_check_branch
      %229 = sbr.rel (0) target = $region49
    $region48: #{tpu_custom_call.1} parent=1 // pred_region
      _
    $region49: #{tpu_custom_call.1} parent=1 // pred_fallthru
      _
    %230 = vsyncpa [#allocation4], 1
    %231 = vsyncpa [#allocation6], 1

</llo_original>
